<compile_context>
chip_gen: v7x
topology: tpu7x:2x2x1
jax: 0.10.0
libtpu: 0.0.40
codegen_flags: <defaults>
</compile_context>

<pallas_src>
import functools

import jax
import jax.numpy as jnp
from jax.experimental import pallas as pl
from jax.experimental.pallas import tpu as pltpu


def _round_up(x, m):
    return ((x + m - 1) // m) * m


def _conv_glu_kernel(p_ref, w_ref, b_ref, o_ref):
    # p_ref: (TM, K_pad)        bf16 im2col patches tile
    # w_ref: (K_pad, 2*N_pad)   bf16 flattened conv weight (resident)
    # b_ref: (1, 2*N_pad)       f32 bias (resident)
    # o_ref: (TM, N_pad)        GLU output tile
    y = jnp.dot(p_ref[...], w_ref[...], preferred_element_type=jnp.float32)
    y = y + b_ref[...]
    n_half = y.shape[-1] // 2            # lane-tile aligned split (N_pad % 128 == 0)
    a = y[:, :n_half]
    g = y[:, n_half:]
    o_ref[...] = (a * jax.nn.sigmoid(g)).astype(o_ref.dtype)


def conv1d_glu_layer(x, w, b, kernel_size, stride=2, out_dtype=jnp.bfloat16):
    """One Conv1d(stride=2, padding=k//2) + GLU layer.

    x: (B, T, C_in)  channels-last (any float dtype; cast to bf16 for the MXU)
    w: (C_out, C_in, k)   -- PyTorch Conv1d weight layout
    b: (C_out,)
    returns (B, T_out, C_out // 2) in `out_dtype`
    """
    B, T, C_in = x.shape
    C_out = int(w.shape[0])
    k = int(kernel_size)
    pad = k // 2
    T_out = (T + 2 * pad - k) // stride + 1

    c_half = C_out // 2
    K = k * C_in
    K_pad = _round_up(K, 128)
    N_pad = _round_up(c_half, 128)

    # ---- patches without a gather: k static strided slices concatenated ----
    x_bf = x.astype(jnp.bfloat16)
    x_pad = jnp.pad(x_bf, ((0, 0), (pad, pad), (0, 0)))
    taps = [
        jax.lax.slice(
            x_pad,
            (0, kk, 0),
            (B, kk + stride * (T_out - 1) + 1, C_in),
            (1, stride, 1),
        )
        for kk in range(k)
    ]  # each (B, T_out, C_in); feature order matches (kk, c) flattening below
    patches = jnp.concatenate(taps, axis=-1)                 # (B, T_out, k*C_in)
    patches = jnp.pad(patches, ((0, 0), (0, 0), (0, K_pad - K)))
    patches = patches.reshape(B * T_out, K_pad)

    # ---- M tiling (pad ragged tail; padded rows are dropped afterwards) ----
    M = B * T_out
    TM = min(512, _round_up(M, 8))
    M_pad = _round_up(M, TM)
    patches = jnp.pad(patches, ((0, M_pad - M), (0, 0)))

    # ---- weights: flatten to (K, C_out), pad each GLU half to N_pad lanes ----
    w_flat = jnp.transpose(w, (2, 1, 0)).reshape(K, C_out)   # row = kk*C_in + c
    w_a = jnp.pad(w_flat[:, :c_half], ((0, K_pad - K), (0, N_pad - c_half)))
    w_g = jnp.pad(w_flat[:, c_half:], ((0, K_pad - K), (0, N_pad - c_half)))
    w_p = jnp.concatenate([w_a, w_g], axis=1).astype(jnp.bfloat16)  # (K_pad, 2*N_pad)

    b_a = jnp.pad(b[:c_half].astype(jnp.float32), (0, N_pad - c_half))
    b_g = jnp.pad(b[c_half:].astype(jnp.float32), (0, N_pad - c_half))
    b_p = jnp.concatenate([b_a, b_g]).reshape(1, 2 * N_pad)

    grid = (M_pad // TM,)
    out_bytes = jnp.dtype(out_dtype).itemsize
    cost = pl.CostEstimate(
        flops=2 * M_pad * K_pad * 2 * N_pad,
        transcendentals=M_pad * N_pad,
        bytes_accessed=(M_pad * K_pad * 2
                        + K_pad * 2 * N_pad * 2
                        + 2 * N_pad * 4
                        + M_pad * N_pad * out_bytes),
    )

    out = pl.pallas_call(
        _conv_glu_kernel,
        out_shape=jax.ShapeDtypeStruct((M_pad, N_pad), out_dtype),
        grid_spec=pltpu.PrefetchScalarGridSpec(
            num_scalar_prefetch=0,
            grid=grid,
            in_specs=[
                pl.BlockSpec((TM, K_pad), lambda i: (i, 0)),        # streamed tiles
                pl.BlockSpec((K_pad, 2 * N_pad), lambda i: (0, 0)), # resident weight
                pl.BlockSpec((1, 2 * N_pad), lambda i: (0, 0)),     # resident bias
            ],
            out_specs=pl.BlockSpec((TM, N_pad), lambda i: (i, 0)),
        ),
        compiler_params=pltpu.CompilerParams(
            dimension_semantics=("parallel",),            # 2-TC sharding on v7x
            vmem_limit_bytes=32 * 1024 * 1024,            # safe on v5e/v6e/v7x
        ),
        cost_estimate=cost,
    )(patches, w_p, b_p)

    # Drop padded rows / padded GLU channels.
    return out[:M, :c_half].reshape(B, T_out, c_half)


def conv1d_subsampler_forward(src_tokens, src_lengths, params, kernel_sizes):
    """Mirrors Conv1dSubsampler.forward.

    src_tokens:  (B, T, in_channels) float32
    src_lengths: (B,) int32
    params: list of (weight, bias) per conv layer (PyTorch Conv1d layouts)
    returns: x of shape (T_out, B, out_channels) float32, out_lengths (B,) int32
    """
    n_layers = len(kernel_sizes)
    x = src_tokens
    for li, ((w, b), k) in enumerate(zip(params, kernel_sizes)):
        out_dtype = jnp.float32 if li == n_layers - 1 else jnp.bfloat16
        x = conv1d_glu_layer(x, w, b, k, out_dtype=out_dtype)
    # (B, T_out, C_out) -> (T_out, B, C_out)  == transpose(1,2).transpose(0,1) in NCW
    # TODO(synk): could be fused into the final layer's out_spec index_map to
    # save one HBM round trip; kept as a plain XLA transpose here.
    x = jnp.transpose(x, (1, 0, 2))

    out_lens = src_lengths
    for _ in kernel_sizes:
        out_lens = jnp.floor(
            (out_lens.astype(jnp.float32) - 1.0) / 2.0 + 1.0
        ).astype(jnp.int32)
    return x, out_lens


def init_params(key, in_channels, mid_channels, out_channels, kernel_sizes):
    """Deterministic synthetic init matching nn.Conv1d shapes."""
    params = []
    n_layers = len(kernel_sizes)
    for i, k in enumerate(kernel_sizes):
        c_in = in_channels if i == 0 else mid_channels // 2
        c_out = mid_channels if i < n_layers - 1 else out_channels * 2
        key, kw, kb = jax.random.split(key, 3)
        w = jax.random.normal(kw, (c_out, c_in, k), dtype=jnp.float32) * 0.1
        b = jax.random.normal(kb, (c_out,), dtype=jnp.float32) * 0.1
        params.append((w, b))
    return params


if __name__ == "__main__":
    # Small deterministic example consistent with the module's forward:
    # src_tokens (B, T, in_channels), src_lengths (B,)
    B, T = 2, 16
    in_channels, mid_channels, out_channels = 4, 32, 16
    kernel_sizes = (3, 3)

    key = jax.random.PRNGKey(0)
    key, kx = jax.random.split(key)
    src_tokens = jax.random.normal(kx, (B, T, in_channels), dtype=jnp.float32)
    src_lengths = jnp.array([16, 12], dtype=jnp.int32)

    params = init_params(key, in_channels, mid_channels, out_channels, kernel_sizes)

    fwd = jax.jit(
        functools.partial(conv1d_subsampler_forward, kernel_sizes=kernel_sizes)
    )
    x_out, out_lens = fwd(src_tokens, src_lengths, params)
    jax.block_until_ready((x_out, out_lens))

    # Sanity checks on shapes implied by the PyTorch module.
    T_out = T
    for _ in kernel_sizes:
        T_out = (T_out + 2 * 1 - 3) // 2 + 1
    assert x_out.shape == (T_out, B, out_channels), x_out.shape
    assert x_out.dtype == jnp.float32, x_out.dtype
    assert out_lens.shape == (B,), out_lens.shape
    assert jnp.all(jnp.isfinite(x_out)), "non-finite output"
    expected_lens = jnp.array([4, 3], dtype=jnp.int32)
    assert jnp.array_equal(out_lens, expected_lens), out_lens

    print("KERNEL_OK")
</pallas_src>

<mosaic_0001>
module attributes {stable_mosaic.version = 11 : i64} {
  func.func @_conv_glu_kernel(%arg0: i32, %arg1: memref<16x128xbf16, #tpu.memory_space<vmem>>, %arg2: memref<128x256xbf16, #tpu.memory_space<vmem>>, %arg3: memref<1x256xf32, #tpu.memory_space<vmem>>, %arg4: memref<16x128xbf16, #tpu.memory_space<vmem>>) attributes {dimension_semantics = [#tpu.dimension_semantics<parallel>], iteration_bounds = array<i64: 1>, scalar_prefetch = 0 : i64, scratch_operands = 0 : i64, tpu.core_type = #tpu.core_type<tc>, window_params = [{transform_indices = @transform_0, window_bounds = array<i64: 16, 128>}, {pipeline_mode = #tpu.pipeline_mode<synchronous>, transform_indices = @transform_1, window_bounds = array<i64: 128, 256>}, {pipeline_mode = #tpu.pipeline_mode<synchronous>, transform_indices = @transform_2, window_bounds = array<i64: 1, 256>}, {transform_indices = @transform_3, window_bounds = array<i64: 16, 128>}]} {
    %c0 = arith.constant 0 : index
    %c0_0 = arith.constant 0 : index
    %0 = vector.load %arg1[%c0, %c0_0] : memref<16x128xbf16, #tpu.memory_space<vmem>>, vector<16x128xbf16>
    %c0_1 = arith.constant 0 : index
    %c0_2 = arith.constant 0 : index
    %1 = vector.load %arg2[%c0_1, %c0_2] : memref<128x256xbf16, #tpu.memory_space<vmem>>, vector<128x256xbf16>
    %cst = arith.constant dense<0.000000e+00> : vector<16x256xf32>
    %2 = tpu.matmul %0, %1, %cst {dimension_numbers = #tpu.dot_dimension_numbers<[1], [0], [0], [1], [0, 0, 1, 1], [], []>} : vector<16x128xbf16>, vector<128x256xbf16>, vector<16x256xf32> -> vector<16x256xf32>
    %c0_3 = arith.constant 0 : index
    %c0_4 = arith.constant 0 : index
    %3 = vector.load %arg3[%c0_3, %c0_4] : memref<1x256xf32, #tpu.memory_space<vmem>>, vector<1x256xf32>
    %4 = vector.broadcast %3 : vector<1x256xf32> to vector<16x256xf32>
    %5 = arith.addf %2, %4 : vector<16x256xf32>
    %6 = vector.extract_strided_slice %5 {offsets = [0, 0], sizes = [16, 128], strides = [1, 1]} : vector<16x256xf32> to vector<16x128xf32>
    %7 = vector.extract_strided_slice %5 {offsets = [0, 128], sizes = [16, 128], strides = [1, 1]} : vector<16x256xf32> to vector<16x128xf32>
    %8 = arith.negf %7 : vector<16x128xf32>
    %9 = math.exp %8 : vector<16x128xf32>
    %cst_5 = arith.constant 1.000000e+00 : f32
    %10 = vector.broadcast %cst_5 : f32 to vector<16x128xf32>
    %11 = arith.addf %10, %9 : vector<16x128xf32>
    %12 = arith.divf %10, %11 : vector<16x128xf32>
    %13 = arith.mulf %6, %12 : vector<16x128xf32>
    %14 = arith.truncf %13 : vector<16x128xf32> to vector<16x128xbf16>
    %c0_6 = arith.constant 0 : index
    %c0_7 = arith.constant 0 : index
    %15 = vector.load %arg4[%c0_6, %c0_7] : memref<16x128xbf16, #tpu.memory_space<vmem>>, vector<16x128xbf16>
    tpu.vector_store %arg4[%c0_6, %c0_7], %14 {strides = array<i32>} : memref<16x128xbf16, #tpu.memory_space<vmem>>, vector<16x128xbf16>,
    return
  }
  func.func @transform_0(%arg0: i32) -> (i32, i32) {
    %c0_i32 = arith.constant 0 : i32
    %c0_i32_0 = arith.constant 0 : i32
    return %arg0, %c0_i32 : i32, i32
  }
  func.func @transform_1(%arg0: i32) -> (i32, i32) {
    %c0_i32 = arith.constant 0 : i32
    %c0_i32_0 = arith.constant 0 : i32
    %c0_i32_1 = arith.constant 0 : i32
    return %c0_i32, %c0_i32_0 : i32, i32
  }
  func.func @transform_2(%arg0: i32) -> (i32, i32) {
    %c0_i32 = arith.constant 0 : i32
    %c0_i32_0 = arith.constant 0 : i32
    %c0_i32_1 = arith.constant 0 : i32
    return %c0_i32, %c0_i32_0 : i32, i32
  }
  func.func @transform_3(%arg0: i32) -> (i32, i32) {
    %c0_i32 = arith.constant 0 : i32
    %c0_i32_0 = arith.constant 0 : i32
    return %arg0, %c0_i32 : i32, i32
  }
}

module attributes {stable_mosaic.version = 11 : i64} {
  func.func @_conv_glu_kernel(%arg0: i32, %arg1: memref<8x128xbf16, #tpu.memory_space<vmem>>, %arg2: memref<128x256xbf16, #tpu.memory_space<vmem>>, %arg3: memref<1x256xf32, #tpu.memory_space<vmem>>, %arg4: memref<8x128xf32, #tpu.memory_space<vmem>>) attributes {dimension_semantics = [#tpu.dimension_semantics<parallel>], iteration_bounds = array<i64: 1>, scalar_prefetch = 0 : i64, scratch_operands = 0 : i64, tpu.core_type = #tpu.core_type<tc>, window_params = [{transform_indices = @transform_0, window_bounds = array<i64: 8, 128>}, {pipeline_mode = #tpu.pipeline_mode<synchronous>, transform_indices = @transform_1, window_bounds = array<i64: 128, 256>}, {pipeline_mode = #tpu.pipeline_mode<synchronous>, transform_indices = @transform_2, window_bounds = array<i64: 1, 256>}, {transform_indices = @transform_3, window_bounds = array<i64: 8, 128>}]} {
    %c0 = arith.constant 0 : index
    %c0_0 = arith.constant 0 : index
    %0 = vector.load %arg1[%c0, %c0_0] : memref<8x128xbf16, #tpu.memory_space<vmem>>, vector<8x128xbf16>
    %c0_1 = arith.constant 0 : index
    %c0_2 = arith.constant 0 : index
    %1 = vector.load %arg2[%c0_1, %c0_2] : memref<128x256xbf16, #tpu.memory_space<vmem>>, vector<128x256xbf16>
    %cst = arith.constant dense<0.000000e+00> : vector<8x256xf32>
    %2 = tpu.matmul %0, %1, %cst {dimension_numbers = #tpu.dot_dimension_numbers<[1], [0], [0], [1], [0, 0, 1, 1], [], []>} : vector<8x128xbf16>, vector<128x256xbf16>, vector<8x256xf32> -> vector<8x256xf32>
    %c0_3 = arith.constant 0 : index
    %c0_4 = arith.constant 0 : index
    %3 = vector.load %arg3[%c0_3, %c0_4] : memref<1x256xf32, #tpu.memory_space<vmem>>, vector<1x256xf32>
    %4 = vector.broadcast %3 : vector<1x256xf32> to vector<8x256xf32>
    %5 = arith.addf %2, %4 : vector<8x256xf32>
    %6 = vector.extract_strided_slice %5 {offsets = [0, 0], sizes = [8, 128], strides = [1, 1]} : vector<8x256xf32> to vector<8x128xf32>
    %7 = vector.extract_strided_slice %5 {offsets = [0, 128], sizes = [8, 128], strides = [1, 1]} : vector<8x256xf32> to vector<8x128xf32>
    %8 = arith.negf %7 : vector<8x128xf32>
    %9 = math.exp %8 : vector<8x128xf32>
    %cst_5 = arith.constant 1.000000e+00 : f32
    %10 = vector.broadcast %cst_5 : f32 to vector<8x128xf32>
    %11 = arith.addf %10, %9 : vector<8x128xf32>
    %12 = arith.divf %10, %11 : vector<8x128xf32>
    %13 = arith.mulf %6, %12 : vector<8x128xf32>
    %c0_6 = arith.constant 0 : index
    %c0_7 = arith.constant 0 : index
    %14 = vector.load %arg4[%c0_6, %c0_7] : memref<8x128xf32, #tpu.memory_space<vmem>>, vector<8x128xf32>
    tpu.vector_store %arg4[%c0_6, %c0_7], %13 {strides = array<i32>} : memref<8x128xf32, #tpu.memory_space<vmem>>, vector<8x128xf32>,
    return
  }
  func.func @transform_0(%arg0: i32) -> (i32, i32) {
    %c0_i32 = arith.constant 0 : i32
    %c0_i32_0 = arith.constant 0 : i32
    return %arg0, %c0_i32 : i32, i32
  }
  func.func @transform_1(%arg0: i32) -> (i32, i32) {
    %c0_i32 = arith.constant 0 : i32
    %c0_i32_0 = arith.constant 0 : i32
    %c0_i32_1 = arith.constant 0 : i32
    return %c0_i32, %c0_i32_0 : i32, i32
  }
  func.func @transform_2(%arg0: i32) -> (i32, i32) {
    %c0_i32 = arith.constant 0 : i32
    %c0_i32_0 = arith.constant 0 : i32
    %c0_i32_1 = arith.constant 0 : i32
    return %c0_i32, %c0_i32_0 : i32, i32
  }
  func.func @transform_3(%arg0: i32) -> (i32, i32) {
    %c0_i32 = arith.constant 0 : i32
    %c0_i32_0 = arith.constant 0 : i32
    return %arg0, %c0_i32 : i32, i32
  }
}

</mosaic_0001>

<llo_original>
// kernel: conv1d_subsampler_forward.2
$region0: #{conv1d_subsampler_forward.2}
  #allocation0 [shape = 'u32[]', space=smem, size = 0x4, offset = 0x4, fixed_abs, tag = 'smem constant byte address 0x4 - core index']
  #allocation1 [shape = 'u32[144,128]{1,0:T(1,128)}', space=vmem, size = 0x12000, scoped, tag = 'internal scratch']
  %s0 = inlined_call_operand.vmem [shape: bf16[16,128], index: 0, kind: input, shape index: {}]
  %s1 = inlined_call_operand.vmem [shape: bf16[128,256], index: 1, kind: input, shape index: {}]
  %s2 = inlined_call_operand.vmem [shape: f32[1,256], index: 2, kind: input, shape index: {}]
  %s3 = inlined_call_operand.vmem [shape: bf16[16,128], index: 3, kind: output, shape index: {}]
  %s4 = sld [smem:[#allocation0]]
  $region22: #{conv1d_subsampler_forward.2} parent=0
    _
  %s6 = ssub.s32 1, %s4
  %s7 = scalar_select 0, %s6, %s4
  // Predicated region
  $region2: #{conv1d_subsampler_forward.2} parent=0 // pred_check
    _
  $region3: #{conv1d_subsampler_forward.2} parent=0 // pred_check_branch
    %9 = sbr.rel (0) target = $region5
  $region4: #{conv1d_subsampler_forward.2} parent=0 // pred_region
    _
  $region5: #{conv1d_subsampler_forward.2} parent=0 // pred_fallthru
    _
  // Predicated region
  $region6: #{conv1d_subsampler_forward.2} parent=0 // pred_check
    _
  $region7: #{conv1d_subsampler_forward.2} parent=0 // pred_check_branch
    %11 = sbr.rel (0) target = $region9
  $region8: #{conv1d_subsampler_forward.2} parent=0 // pred_region
    _
  $region9: #{conv1d_subsampler_forward.2} parent=0 // pred_fallthru
    _
  // Predicated region
  $region10: #{conv1d_subsampler_forward.2} parent=0 // pred_check
    _
  $region11: #{conv1d_subsampler_forward.2} parent=0 // pred_check_branch
    %13 = sbr.rel (0) target = $region13
  $region12: #{conv1d_subsampler_forward.2} parent=0 // pred_region
    _
  $region13: #{conv1d_subsampler_forward.2} parent=0 // pred_fallthru
    _
  %v15 = vld [vmem:[%s0] sm:$0xf]
  %v16 = vld [vmem:[%s0 + $0x4] sm:$0xf]
  %v17 = vld [vmem:[%s1] sm:$0xff]
  %v18 = vld [vmem:[%s1 + $0x8] sm:$0xff]
  %v19 = vld [vmem:[%s1 + $0x10] sm:$0xff]
  %v20 = vld [vmem:[%s1 + $0x18] sm:$0xff]
  %v21 = vld [vmem:[%s1 + $0x20] sm:$0xff]
  %v22 = vld [vmem:[%s1 + $0x28] sm:$0xff]
  %v23 = vld [vmem:[%s1 + $0x30] sm:$0xff]
  %v24 = vld [vmem:[%s1 + $0x38] sm:$0xff]
  %v25 = vld [vmem:[%s1 + $0x40] sm:$0xff]
  %v26 = vld [vmem:[%s1 + $0x48] sm:$0xff]
  %v27 = vld [vmem:[%s1 + $0x50] sm:$0xff]
  %v28 = vld [vmem:[%s1 + $0x58] sm:$0xff]
  %v29 = vld [vmem:[%s1 + $0x60] sm:$0xff]
  %v30 = vld [vmem:[%s1 + $0x68] sm:$0xff]
  %v31 = vld [vmem:[%s1 + $0x70] sm:$0xff]
  %v32 = vld [vmem:[%s1 + $0x78] sm:$0xff]
  %v33 = vld [vmem:[%s2] sm:$0x3]
  %v35 = vlaneseq
  %v36 = vshrl.u32 %v35, 7
  %v37 = vsub.s32 0, %v36
  %v38 = vrot.slane %v33, %v37
  %v39 = vlaneseq
  %v40 = vshrl.u32 %v39, 7
  %v41 = vsub.s32 1, %v40
  %v42 = vrot.slane %v33, %v41
  %v47 = vunpack.c.l.b16 %v15
  %v48 = vunpack.c.l.b16 %v16
  %v49 = vpack.c.b16 %v48, %v47
  %v67 = vunpack.c.l.b16 %v17
  %v68 = vunpack.c.h.b16 %v17
  %v69 = vunpack.c.l.b16 %v18
  %v70 = vunpack.c.h.b16 %v18
  %v71 = vunpack.c.l.b16 %v19
  %v72 = vunpack.c.h.b16 %v19
  %v73 = vunpack.c.l.b16 %v20
  %v74 = vunpack.c.h.b16 %v20
  %v75 = vunpack.c.l.b16 %v21
  %v76 = vunpack.c.h.b16 %v21
  %v77 = vunpack.c.l.b16 %v22
  %v78 = vunpack.c.h.b16 %v22
  %v79 = vunpack.c.l.b16 %v23
  %v80 = vunpack.c.h.b16 %v23
  %v81 = vunpack.c.l.b16 %v24
  %v82 = vunpack.c.h.b16 %v24
  %v83 = vunpack.c.l.b16 %v25
  %v84 = vunpack.c.h.b16 %v25
  %v85 = vunpack.c.l.b16 %v26
  %v86 = vunpack.c.h.b16 %v26
  %v87 = vunpack.c.l.b16 %v27
  %v88 = vunpack.c.h.b16 %v27
  %v89 = vunpack.c.l.b16 %v28
  %v90 = vunpack.c.h.b16 %v28
  %v91 = vunpack.c.l.b16 %v29
  %v92 = vunpack.c.h.b16 %v29
  %v93 = vunpack.c.l.b16 %v30
  %v94 = vunpack.c.h.b16 %v30
  %v95 = vunpack.c.l.b16 %v31
  %v96 = vunpack.c.h.b16 %v31
  %v97 = vunpack.c.l.b16 %v32
  %v98 = vunpack.c.h.b16 %v32
  %v99 = vpack.c.b16 %v69, %v67
  %v100 = vpack.c.b16 %v70, %v68
  %v101 = vpack.c.b16 %v73, %v71
  %v102 = vpack.c.b16 %v74, %v72
  %v103 = vpack.c.b16 %v77, %v75
  %v104 = vpack.c.b16 %v78, %v76
  %v105 = vpack.c.b16 %v81, %v79
  %v106 = vpack.c.b16 %v82, %v80
  %v107 = vpack.c.b16 %v85, %v83
  %v108 = vpack.c.b16 %v86, %v84
  %v109 = vpack.c.b16 %v89, %v87
  %v110 = vpack.c.b16 %v90, %v88
  %v111 = vpack.c.b16 %v93, %v91
  %v112 = vpack.c.b16 %v94, %v92
  %v113 = vpack.c.b16 %v97, %v95
  %v114 = vpack.c.b16 %v98, %v96
  %131 = vmatprep.subr.bf16.mxu0 %v100
  %132 = vmatpush1.bf16.msra.mxu0 %v99
  %133 = vmatprep.subr.bf16.mxu0 %v102
  %134 = vmatpush1.bf16.msra.mxu0 %v101
  %135 = vmatprep.subr.bf16.mxu0 %v104
  %136 = vmatpush1.bf16.msra.mxu0 %v103
  %137 = vmatprep.subr.bf16.mxu0 %v106
  %138 = vmatpush1.bf16.msra.mxu0 %v105
  %139 = vmatprep.subr.bf16.mxu0 %v108
  %140 = vmatpush1.bf16.msra.mxu0 %v107
  %141 = vmatprep.subr.bf16.mxu0 %v110
  %142 = vmatpush1.bf16.msra.mxu0 %v109
  %143 = vmatprep.subr.bf16.mxu0 %v112
  %144 = vmatpush1.bf16.msra.mxu0 %v111
  %145 = vmatprep.subr.bf16.mxu0 %v114
  %146 = vmatpush1.bf16.msra.mxu0 %v113
  %147 = vmatprep.subr.bf16.mxu0 0
  %148 = vmatpush1.bf16.msra.mxu0 0
  %149 = vmatprep.subr.bf16.mxu0 0
  %150 = vmatpush1.bf16.msra.mxu0 0
  %151 = vmatprep.subr.bf16.mxu0 0
  %152 = vmatpush1.bf16.msra.mxu0 0
  %153 = vmatprep.subr.bf16.mxu0 0
  %154 = vmatpush1.bf16.msra.mxu0 0
  %155 = vmatprep.subr.bf16.mxu0 0
  %156 = vmatpush1.bf16.msra.mxu0 0
  %157 = vmatprep.subr.bf16.mxu0 0
  %158 = vmatpush1.bf16.msra.mxu0 0
  %159 = vmatprep.subr.bf16.mxu0 0
  %160 = vmatpush1.bf16.msra.mxu0 0
  %161 = vmatprep.subr.bf16.mxu0 0
  %162 = vmatpush1.bf16.msra.mxu0 0
  %163 = vmatprep.mubr.bf16.mxu0 0
  %164 = vmatmul.mubr.bf16.gmra.mrb[0].mxu0 %v49
  %v165 = vpop.f32.mrb[0].mxu0
  %v166 = vadd.f32 %v38, %v165
  %v167 = vpop.f32.mrb[0].mxu0
  %v168 = vadd.f32 %v42, %v167
  %v169 = vpop.f32.mrb[0].mxu0
  %v170 = vadd.f32 %v38, %v169
  %v171 = vpop.f32.mrb[0].mxu0
  %v172 = vadd.f32 %v42, %v171
  %173 = vdwg.mxu0
  %v174 = vxor.u32 %v168, 2147483648
  %v175 = vxor.u32 %v172, 2147483648
  %v176 = vmul.f32 %v174, 1.442695
  %v177 = vpow.pop %v176
  %v178 = vmul.f32 %v175, 1.442695
  %v179 = vpow.pop %v178
  %v180 = vadd.f32 %v177, 1.0
  %v181 = vadd.f32 %v179, 1.0
  %v182 = vrcp.pop %v180
  %v183 = vmul.f32 1.0, %v182
  %v184 = vrcp.pop %v181
  %v185 = vmul.f32 1.0, %v184
  %v186 = vmul.f32 %v166, %v183
  %v187 = vmul.f32 %v170, %v185
  %v188 = vpack.c.bf16 %v187, %v186
  %v190 = vunpack.c.l.b16 %v188
  %v191 = vunpack.c.h.b16 %v188
  %v192 = vpack.c.b16 %v190, %v190
  %v193 = vpack.c.b16 %v191, %v191
  %196 = vst [vmem:[%s3] sm:$0xf] %v192
  %197 = vst [vmem:[%s3 + $0x4] sm:$0xf] %v193
  // Predicated region
  $region14: #{conv1d_subsampler_forward.2} parent=0 // pred_check
    _
  $region15: #{conv1d_subsampler_forward.2} parent=0 // pred_check_branch
    %199 = sbr.rel (0) target = $region17
  $region16: #{conv1d_subsampler_forward.2} parent=0 // pred_region
    _
  $region17: #{conv1d_subsampler_forward.2} parent=0 // pred_fallthru
    _
  // Predicated region
  $region18: #{conv1d_subsampler_forward.2} parent=0 // pred_check
    _
  $region19: #{conv1d_subsampler_forward.2} parent=0 // pred_check_branch
    %201 = sbr.rel (0) target = $region21
  $region20: #{conv1d_subsampler_forward.2} parent=0 // pred_region
    _
  $region21: #{conv1d_subsampler_forward.2} parent=0 // pred_fallthru
    _

// kernel: conv1d_subsampler_forward.3
$region0: #{conv1d_subsampler_forward.3}
  #allocation0 [shape = 'u32[]', space=smem, size = 0x4, offset = 0x4, fixed_abs, tag = 'smem constant byte address 0x4 - core index']
  #allocation1 [shape = 'u32[144,128]{1,0:T(1,128)}', space=vmem, size = 0x12000, scoped, tag = 'internal scratch']
  %s0 = inlined_call_operand.vmem [shape: bf16[8,128], index: 0, kind: input, shape index: {}]
  %s1 = inlined_call_operand.vmem [shape: bf16[128,256], index: 1, kind: input, shape index: {}]
  %s2 = inlined_call_operand.vmem [shape: f32[1,256], index: 2, kind: input, shape index: {}]
  %s3 = inlined_call_operand.vmem [shape: f32[8,128], index: 3, kind: output, shape index: {}]
  %s4 = sld [smem:[#allocation0]]
  $region22: #{conv1d_subsampler_forward.3} parent=0
    _
  %s6 = ssub.s32 1, %s4
  %s7 = scalar_select 0, %s6, %s4
  // Predicated region
  $region2: #{conv1d_subsampler_forward.3} parent=0 // pred_check
    _
  $region3: #{conv1d_subsampler_forward.3} parent=0 // pred_check_branch
    %9 = sbr.rel (0) target = $region5
  $region4: #{conv1d_subsampler_forward.3} parent=0 // pred_region
    _
  $region5: #{conv1d_subsampler_forward.3} parent=0 // pred_fallthru
    _
  // Predicated region
  $region6: #{conv1d_subsampler_forward.3} parent=0 // pred_check
    _
  $region7: #{conv1d_subsampler_forward.3} parent=0 // pred_check_branch
    %11 = sbr.rel (0) target = $region9
  $region8: #{conv1d_subsampler_forward.3} parent=0 // pred_region
    _
  $region9: #{conv1d_subsampler_forward.3} parent=0 // pred_fallthru
    _
  // Predicated region
  $region10: #{conv1d_subsampler_forward.3} parent=0 // pred_check
    _
  $region11: #{conv1d_subsampler_forward.3} parent=0 // pred_check_branch
    %13 = sbr.rel (0) target = $region13
  $region12: #{conv1d_subsampler_forward.3} parent=0 // pred_region
    _
  $region13: #{conv1d_subsampler_forward.3} parent=0 // pred_fallthru
    _
  %v15 = vld [vmem:[%s0] sm:$0xf]
  %v16 = vld [vmem:[%s1] sm:$0xff]
  %v17 = vld [vmem:[%s1 + $0x8] sm:$0xff]
  %v18 = vld [vmem:[%s1 + $0x10] sm:$0xff]
  %v19 = vld [vmem:[%s1 + $0x18] sm:$0xff]
  %v20 = vld [vmem:[%s1 + $0x20] sm:$0xff]
  %v21 = vld [vmem:[%s1 + $0x28] sm:$0xff]
  %v22 = vld [vmem:[%s1 + $0x30] sm:$0xff]
  %v23 = vld [vmem:[%s1 + $0x38] sm:$0xff]
  %v24 = vld [vmem:[%s1 + $0x40] sm:$0xff]
  %v25 = vld [vmem:[%s1 + $0x48] sm:$0xff]
  %v26 = vld [vmem:[%s1 + $0x50] sm:$0xff]
  %v27 = vld [vmem:[%s1 + $0x58] sm:$0xff]
  %v28 = vld [vmem:[%s1 + $0x60] sm:$0xff]
  %v29 = vld [vmem:[%s1 + $0x68] sm:$0xff]
  %v30 = vld [vmem:[%s1 + $0x70] sm:$0xff]
  %v31 = vld [vmem:[%s1 + $0x78] sm:$0xff]
  %v32 = vld [vmem:[%s2] sm:$0x3]
  %v34 = vlaneseq
  %v35 = vshrl.u32 %v34, 7
  %v36 = vsub.s32 0, %v35
  %v37 = vrot.slane %v32, %v36
  %v38 = vlaneseq
  %v39 = vshrl.u32 %v38, 7
  %v40 = vsub.s32 1, %v39
  %v41 = vrot.slane %v32, %v40
  %v60 = vunpack.c.l.b16 %v16
  %v61 = vunpack.c.h.b16 %v16
  %v62 = vunpack.c.l.b16 %v17
  %v63 = vunpack.c.h.b16 %v17
  %v64 = vunpack.c.l.b16 %v18
  %v65 = vunpack.c.h.b16 %v18
  %v66 = vunpack.c.l.b16 %v19
  %v67 = vunpack.c.h.b16 %v19
  %v68 = vunpack.c.l.b16 %v20
  %v69 = vunpack.c.h.b16 %v20
  %v70 = vunpack.c.l.b16 %v21
  %v71 = vunpack.c.h.b16 %v21
  %v72 = vunpack.c.l.b16 %v22
  %v73 = vunpack.c.h.b16 %v22
  %v74 = vunpack.c.l.b16 %v23
  %v75 = vunpack.c.h.b16 %v23
  %v76 = vunpack.c.l.b16 %v24
  %v77 = vunpack.c.h.b16 %v24
  %v78 = vunpack.c.l.b16 %v25
  %v79 = vunpack.c.h.b16 %v25
  %v80 = vunpack.c.l.b16 %v26
  %v81 = vunpack.c.h.b16 %v26
  %v82 = vunpack.c.l.b16 %v27
  %v83 = vunpack.c.h.b16 %v27
  %v84 = vunpack.c.l.b16 %v28
  %v85 = vunpack.c.h.b16 %v28
  %v86 = vunpack.c.l.b16 %v29
  %v87 = vunpack.c.h.b16 %v29
  %v88 = vunpack.c.l.b16 %v30
  %v89 = vunpack.c.h.b16 %v30
  %v90 = vunpack.c.l.b16 %v31
  %v91 = vunpack.c.h.b16 %v31
  %v92 = vpack.c.b16 %v62, %v60
  %v93 = vpack.c.b16 %v63, %v61
  %v94 = vpack.c.b16 %v66, %v64
  %v95 = vpack.c.b16 %v67, %v65
  %v96 = vpack.c.b16 %v70, %v68
  %v97 = vpack.c.b16 %v71, %v69
  %v98 = vpack.c.b16 %v74, %v72
  %v99 = vpack.c.b16 %v75, %v73
  %v100 = vpack.c.b16 %v78, %v76
  %v101 = vpack.c.b16 %v79, %v77
  %v102 = vpack.c.b16 %v82, %v80
  %v103 = vpack.c.b16 %v83, %v81
  %v104 = vpack.c.b16 %v86, %v84
  %v105 = vpack.c.b16 %v87, %v85
  %v106 = vpack.c.b16 %v90, %v88
  %v107 = vpack.c.b16 %v91, %v89
  %124 = vmatprep.subr.bf16.mxu0 %v93
  %125 = vmatpush1.bf16.msra.mxu0 %v92
  %126 = vmatprep.subr.bf16.mxu0 %v95
  %127 = vmatpush1.bf16.msra.mxu0 %v94
  %128 = vmatprep.subr.bf16.mxu0 %v97
  %129 = vmatpush1.bf16.msra.mxu0 %v96
  %130 = vmatprep.subr.bf16.mxu0 %v99
  %131 = vmatpush1.bf16.msra.mxu0 %v98
  %132 = vmatprep.subr.bf16.mxu0 %v101
  %133 = vmatpush1.bf16.msra.mxu0 %v100
  %134 = vmatprep.subr.bf16.mxu0 %v103
  %135 = vmatpush1.bf16.msra.mxu0 %v102
  %136 = vmatprep.subr.bf16.mxu0 %v105
  %137 = vmatpush1.bf16.msra.mxu0 %v104
  %138 = vmatprep.subr.bf16.mxu0 %v107
  %139 = vmatpush1.bf16.msra.mxu0 %v106
  %140 = vmatprep.subr.bf16.mxu0 0
  %141 = vmatpush1.bf16.msra.mxu0 0
  %142 = vmatprep.subr.bf16.mxu0 0
  %143 = vmatpush1.bf16.msra.mxu0 0
  %144 = vmatprep.subr.bf16.mxu0 0
  %145 = vmatpush1.bf16.msra.mxu0 0
  %146 = vmatprep.subr.bf16.mxu0 0
  %147 = vmatpush1.bf16.msra.mxu0 0
  %148 = vmatprep.subr.bf16.mxu0 0
  %149 = vmatpush1.bf16.msra.mxu0 0
  %150 = vmatprep.subr.bf16.mxu0 0
  %151 = vmatpush1.bf16.msra.mxu0 0
  %152 = vmatprep.subr.bf16.mxu0 0
  %153 = vmatpush1.bf16.msra.mxu0 0
  %154 = vmatprep.subr.bf16.mxu0 0
  %155 = vmatpush1.bf16.msra.mxu0 0
  %156 = vmatprep.mubr.bf16.mxu0 0
  %157 = vmatmul.mubr.bf16.gmra.mrb[0].mxu0 %v15
  %v158 = vpop.f32.mrb[0].mxu0
  %v159 = vadd.f32 %v37, %v158
  %v160 = vpop.f32.mrb[0].mxu0
  %v161 = vadd.f32 %v41, %v160
  %v162 = vpop.f32.mrb[0].mxu0
  %v163 = vpop.f32.mrb[0].mxu0
  %164 = vdwg.mxu0
  %v165 = vxor.u32 %v161, 2147483648
  %v166 = vmul.f32 %v165, 1.442695
  %v167 = vpow.pop %v166
  %v168 = vadd.f32 %v167, 1.0
  %v169 = vrcp.pop %v168
  %v170 = vmul.f32 1.0, %v169
  %v171 = vmul.f32 %v159, %v170
  %172 = vst [vmem:[%s3] sm:$0xff] %v171
  // Predicated region
  $region14: #{conv1d_subsampler_forward.3} parent=0 // pred_check
    _
  $region15: #{conv1d_subsampler_forward.3} parent=0 // pred_check_branch
    %174 = sbr.rel (0) target = $region17
  $region16: #{conv1d_subsampler_forward.3} parent=0 // pred_region
    _
  $region17: #{conv1d_subsampler_forward.3} parent=0 // pred_fallthru
    _
  // Predicated region
  $region18: #{conv1d_subsampler_forward.3} parent=0 // pred_check
    _
  $region19: #{conv1d_subsampler_forward.3} parent=0 // pred_check_branch
    %176 = sbr.rel (0) target = $region21
  $region20: #{conv1d_subsampler_forward.3} parent=0 // pred_region
    _
  $region21: #{conv1d_subsampler_forward.3} parent=0 // pred_fallthru
    _

</llo_original>
